<compile_context>
chip_gen: v7x
topology: tpu7x:2x2x1
jax: 0.10.0
libtpu: 0.0.40
codegen_flags: <defaults>
</compile_context>

<pallas_src>
import jax
import jax.numpy as jnp
from jax.experimental import pallas as pl
from jax.experimental.pallas import tpu as pltpu

_MIB = 1024 * 1024


def _round_up(x, m):
    return ((x + m - 1) // m) * m


def _tpu_vmem_and_cores():
    """Return (physical VMEM bytes per TensorCore, TensorCores per chip)."""
    vmem_phys = 128 * _MIB
    num_tc = 1
    try:
        vmem_phys = int(pltpu.get_tpu_info().vmem_capacity_bytes)
    except Exception:
        pass
    try:
        kind = jax.devices()[0].device_kind.lower()
        if "v7" in kind:            # v7x: 2 TCs/chip, 64 MiB VMEM per TC
            num_tc = 2
            vmem_phys = min(vmem_phys, 64 * _MIB)
    except Exception:
        pass
    return vmem_phys, num_tc


def _layernorm_kernel(eps, n_elems, use_mask):
    inv_n = 1.0 / float(n_elems)
    inv_nm1 = 1.0 / float(max(n_elems - 1, 1))  # unbiased (Bessel) divisor

    def _body(x, gamma, beta, mask, out_ref):
        # Two-pass moments over the (resident) f32 copy: stable, no extra HBM.
        mean = jnp.sum(x, axis=-1, keepdims=True) * inv_n        # (T, 1)
        if mask is not None:
            # padded lanes hold x == 0; zero the mean there so they contribute
            # nothing to the variance and write exact zeros.
            centered = x - mean * mask
        else:
            centered = x - mean
        var = jnp.sum(centered * centered, axis=-1, keepdims=True) * inv_nm1
        inv = pl.reciprocal(jnp.sqrt(var) + eps)                  # exact, per row
        out_ref[...] = (centered * inv * gamma + beta).astype(out_ref.dtype)

    if use_mask:
        def kernel(x_ref, gamma_ref, beta_ref, mask_ref, o_ref):
            _body(x_ref[...].astype(jnp.float32), gamma_ref[...],
                  beta_ref[...], mask_ref[...], o_ref)
    else:
        def kernel(x_ref, gamma_ref, beta_ref, o_ref):
            _body(x_ref[...].astype(jnp.float32), gamma_ref[...],
                  beta_ref[...], None, o_ref)
    return kernel


def _pick_tile_n(n_rows, chw_pad, itemsize, block_budget, num_tc):
    """Sublane-aligned rows per block, and the padded row count."""
    sub = max(8, 32 // max(int(itemsize), 1))      # 8 (f32), 16 (bf16), 32 (int8)
    row_bytes = chw_pad * itemsize
    max_tile = max(sub, (block_budget // max(row_bytes, 1)) // sub * sub)
    tile = min(max_tile, _round_up(n_rows, sub))
    if num_tc >= 2 and n_rows > sub:
        # keep >= num_tc grid steps so both v7x TensorCores get balanced work
        per_core = _round_up(pl.cdiv(n_rows, num_tc), sub)
        tile = min(tile, max(sub, per_core))
    n_pad = _round_up(n_rows, tile)
    return tile, n_pad


def layer_norm(x, gamma, beta, eps=1e-5):
    """x: (N, C, H, W); gamma, beta: (C,)."""
    N, C, H, W = x.shape
    CHW = C * H * W
    HW = H * W
    assert CHW > 1, "per-row unbiased std needs at least 2 elements"

    CHW_pad = _round_up(CHW, 128)
    lane_pad = CHW_pad - CHW
    use_mask = lane_pad > 0

    vmem_phys, num_tc = _tpu_vmem_and_cores()
    if vmem_phys <= 64 * _MIB:                     # v7x-class
        block_budget, vmem_limit = 4 * _MIB, 48 * _MIB
    else:                                          # v5e / v6e (128 MiB physical)
        block_budget, vmem_limit = 6 * _MIB, 96 * _MIB

    tile_n, N_pad = _pick_tile_n(N, CHW_pad, x.dtype.itemsize, block_budget, num_tc)

    # Double-buffered in+out blocks plus ~3 block-sized f32 temps must fit VMEM.
    est = tile_n * CHW_pad * (4 * x.dtype.itemsize + 3 * 4)
    if est > vmem_limit:
        # TODO(synk): column-tiled two-pass fallback (inner "arbitrary" axis over
        # CHW with s1/s2 scratch accumulators) for very large C*H*W.
        raise NotImplementedError(
            f"C*H*W={CHW} too large for a single-block row reduction "
            f"(~{est / _MIB:.1f} MiB > {vmem_limit / _MIB:.0f} MiB VMEM budget)")

    # Lane-dense 2-D view: rows -> sublanes, C*H*W -> lanes. Zero-pad so blocks
    # are (8k, 128k)-shaped and output stores are unmasked vst.
    x2 = x.reshape(N, CHW)
    if lane_pad or N_pad != N:
        x2 = jnp.pad(x2, ((0, N_pad - N), (0, lane_pad)))

    # Pre-broadcast affine params to resident, lane-dense f32 rows.
    gamma_row = jnp.repeat(gamma.astype(jnp.float32), HW).reshape(1, CHW)
    beta_row = jnp.repeat(beta.astype(jnp.float32), HW).reshape(1, CHW)
    if lane_pad:
        gamma_row = jnp.pad(gamma_row, ((0, 0), (0, lane_pad)))
        beta_row = jnp.pad(beta_row, ((0, 0), (0, lane_pad)))

    row_spec = pl.BlockSpec((1, CHW_pad), lambda i: (0, 0))       # stays resident
    in_specs = [pl.BlockSpec((tile_n, CHW_pad), lambda i: (i, 0)),
                row_spec, row_spec]
    operands = [x2, gamma_row, beta_row]
    if use_mask:
        mask_row = jnp.pad(jnp.ones((1, CHW), jnp.float32), ((0, 0), (0, lane_pad)))
        in_specs.append(row_spec)
        operands.append(mask_row)

    grid = (N_pad // tile_n,)

    out2 = pl.pallas_call(
        _layernorm_kernel(eps, CHW, use_mask),
        out_shape=jax.ShapeDtypeStruct((N_pad, CHW_pad), x.dtype),
        grid_spec=pltpu.PrefetchScalarGridSpec(
            num_scalar_prefetch=0,
            grid=grid,
            in_specs=in_specs,
            out_specs=pl.BlockSpec((tile_n, CHW_pad), lambda i: (i, 0)),
        ),
        compiler_params=pltpu.CompilerParams(
            dimension_semantics=("parallel",),
            vmem_limit_bytes=vmem_limit),
    )(*operands)

    return out2[:N, :CHW].reshape(N, C, H, W)


def layer_norm_ref(x, gamma, beta, eps=1e-5):
    """Pure-JAX reference mirroring the PyTorch module exactly."""
    N = x.shape[0]
    xf = x.reshape(N, -1).astype(jnp.float32)
    mean = xf.mean(axis=1)
    std = jnp.sqrt(jnp.sum((xf - mean[:, None]) ** 2, axis=1) / (xf.shape[1] - 1))
    shape = (-1,) + (1,) * (x.ndim - 1)
    y = (x.astype(jnp.float32) - mean.reshape(shape)) / (std.reshape(shape) + eps)
    gshape = (1, -1) + (1,) * (x.ndim - 2)
    y = y * gamma.reshape(gshape) + beta.reshape(gshape)
    return y.astype(x.dtype)


if __name__ == "__main__":
    key = jax.random.PRNGKey(0)
    kx, kg = jax.random.split(key)

    N, C, H, W = 2, 4, 16, 16
    x = jax.random.normal(kx, (N, C, H, W), dtype=jnp.float32)
    # gamma ~ uniform(0,1) (matches torch .uniform_()), beta = zeros
    gamma = jax.random.uniform(kg, (C,), dtype=jnp.float32)
    beta = jnp.zeros((C,), dtype=jnp.float32)

    out = jax.block_until_ready(layer_norm(x, gamma, beta))
    ref = jax.block_until_ready(layer_norm_ref(x, gamma, beta))

    assert out.shape == (N, C, H, W)
    assert jnp.allclose(out, ref, atol=1e-4, rtol=1e-4), "mismatch vs reference"

    print("KERNEL_OK")
</pallas_src>

<mosaic_0001>
module attributes {stable_mosaic.version = 11 : i64} {
  func.func @kernel(%arg0: i32, %arg1: memref<8x1024xf32, #tpu.memory_space<vmem>>, %arg2: memref<1x1024xf32, #tpu.memory_space<vmem>>, %arg3: memref<1x1024xf32, #tpu.memory_space<vmem>>, %arg4: memref<8x1024xf32, #tpu.memory_space<vmem>>) attributes {dimension_semantics = [#tpu.dimension_semantics<parallel>], iteration_bounds = array<i64: 1>, scalar_prefetch = 0 : i64, scratch_operands = 0 : i64, tpu.core_type = #tpu.core_type<tc>, window_params = [{transform_indices = @transform_0, window_bounds = array<i64: 8, 1024>}, {pipeline_mode = #tpu.pipeline_mode<synchronous>, transform_indices = @transform_1, window_bounds = array<i64: 1, 1024>}, {pipeline_mode = #tpu.pipeline_mode<synchronous>, transform_indices = @transform_2, window_bounds = array<i64: 1, 1024>}, {transform_indices = @transform_3, window_bounds = array<i64: 8, 1024>}]} {
    %c0 = arith.constant 0 : index
    %c0_0 = arith.constant 0 : index
    %0 = vector.load %arg1[%c0, %c0_0] : memref<8x1024xf32, #tpu.memory_space<vmem>>, vector<8x1024xf32>
    %c0_1 = arith.constant 0 : index
    %c0_2 = arith.constant 0 : index
    %1 = vector.load %arg2[%c0_1, %c0_2] : memref<1x1024xf32, #tpu.memory_space<vmem>>, vector<1x1024xf32>
    %c0_3 = arith.constant 0 : index
    %c0_4 = arith.constant 0 : index
    %2 = vector.load %arg3[%c0_3, %c0_4] : memref<1x1024xf32, #tpu.memory_space<vmem>>, vector<1x1024xf32>
    %cst = arith.constant dense<0.000000e+00> : vector<8xf32>
    %3 = vector.multi_reduction <add>, %0, %cst [1] : vector<8x1024xf32> to vector<8xf32>
    %4 = vector.shape_cast %3 : vector<8xf32> to vector<8x1xf32>
    %cst_5 = arith.constant 9.765625E-4 : f32
    %5 = vector.broadcast %cst_5 : f32 to vector<8x1xf32>
    %6 = arith.mulf %4, %5 : vector<8x1xf32>
    %7 = vector.broadcast %6 : vector<8x1xf32> to vector<8x1024xf32>
    %8 = arith.subf %0, %7 : vector<8x1024xf32>
    %9 = arith.mulf %8, %8 : vector<8x1024xf32>
    %cst_6 = arith.constant dense<0.000000e+00> : vector<8xf32>
    %10 = vector.multi_reduction <add>, %9, %cst_6 [1] : vector<8x1024xf32> to vector<8xf32>
    %11 = vector.shape_cast %10 : vector<8xf32> to vector<8x1xf32>
    %cst_7 = arith.constant 9.77517105E-4 : f32
    %12 = vector.broadcast %cst_7 : f32 to vector<8x1xf32>
    %13 = arith.mulf %11, %12 : vector<8x1xf32>
    %14 = math.sqrt %13 : vector<8x1xf32>
    %cst_8 = arith.constant 9.99999974E-6 : f32
    %15 = vector.broadcast %cst_8 : f32 to vector<8x1xf32>
    %16 = arith.addf %14, %15 : vector<8x1xf32>
    %17 = tpu.reciprocal %16 : vector<8x1xf32> -> vector<8x1xf32>
    %18 = vector.broadcast %17 : vector<8x1xf32> to vector<8x1024xf32>
    %19 = arith.mulf %8, %18 : vector<8x1024xf32>
    %20 = vector.broadcast %1 : vector<1x1024xf32> to vector<8x1024xf32>
    %21 = arith.mulf %19, %20 : vector<8x1024xf32>
    %22 = vector.broadcast %2 : vector<1x1024xf32> to vector<8x1024xf32>
    %23 = arith.addf %21, %22 : vector<8x1024xf32>
    %c0_9 = arith.constant 0 : index
    %c0_10 = arith.constant 0 : index
    %24 = vector.load %arg4[%c0_9, %c0_10] : memref<8x1024xf32, #tpu.memory_space<vmem>>, vector<8x1024xf32>
    tpu.vector_store %arg4[%c0_9, %c0_10], %23 {strides = array<i32>} : memref<8x1024xf32, #tpu.memory_space<vmem>>, vector<8x1024xf32>,
    return
  }
  func.func @transform_0(%arg0: i32) -> (i32, i32) {
    %c0_i32 = arith.constant 0 : i32
    %c0_i32_0 = arith.constant 0 : i32
    return %arg0, %c0_i32 : i32, i32
  }
  func.func @transform_1(%arg0: i32) -> (i32, i32) {
    %c0_i32 = arith.constant 0 : i32
    %c0_i32_0 = arith.constant 0 : i32
    %c0_i32_1 = arith.constant 0 : i32
    return %c0_i32, %c0_i32_0 : i32, i32
  }
  func.func @transform_2(%arg0: i32) -> (i32, i32) {
    %c0_i32 = arith.constant 0 : i32
    %c0_i32_0 = arith.constant 0 : i32
    %c0_i32_1 = arith.constant 0 : i32
    return %c0_i32, %c0_i32_0 : i32, i32
  }
  func.func @transform_3(%arg0: i32) -> (i32, i32) {
    %c0_i32 = arith.constant 0 : i32
    %c0_i32_0 = arith.constant 0 : i32
    return %arg0, %c0_i32 : i32, i32
  }
}

</mosaic_0001>

<llo_original>
// kernel: tpu_custom_call.1
$region0: #{tpu_custom_call.1}
  #allocation0 [shape = 'u32[]', space=smem, size = 0x4, offset = 0x4, fixed_abs, tag = 'smem constant byte address 0x4 - core index']
  #allocation1 [shape = 'u32[144,128]{1,0:T(1,128)}', space=vmem, size = 0x12000, scoped, tag = 'internal scratch']
  %s0 = inlined_call_operand.hbm [shape: f32[8,1024], index: 0, kind: input, shape index: {}]
  %s1 = inlined_call_operand.hbm [shape: f32[1,1024], index: 1, kind: input, shape index: {}]
  %s2 = inlined_call_operand.hbm [shape: f32[1,1024], index: 2, kind: input, shape index: {}]
  %s3 = inlined_call_operand.hbm [shape: f32[8,1024], index: 3, kind: output, shape index: {}]
  %s4 = sld [smem:[#allocation0]]
  $region34: #{tpu_custom_call.1} parent=0
    _
  %s6 = ssub.s32 1, %s4
  %s7 = scalar_select 0, %s6, %s4
  $region1: #{tpu_custom_call.1} parent=0
    #allocation2 [shape = 'u8[32768]{0}', space=vmem, size = 0x8000, scoped, tag = 'input window, operand 0, single buffered']
    #allocation3 [shape = 's32[1]{0}', space=sflag, size = 0x4, scoped, tag = 'scoped memory for tpu_custom_call.1']
    #allocation4 [shape = 's32[1]{0}', space=sflag, size = 0x4, scoped, tag = 'scoped memory for tpu_custom_call.1']
    #allocation5 [shape = 'u8[4096]{0}', space=vmem, size = 0x1000, scoped, tag = 'input window, operand 1, single buffered']
    #allocation6 [shape = 's32[1]{0}', space=sflag, size = 0x4, scoped, tag = 'scoped memory for tpu_custom_call.1']
    #allocation7 [shape = 'u8[4096]{0}', space=vmem, size = 0x1000, scoped, tag = 'input window, operand 2, single buffered']
    #allocation8 [shape = 'u8[32768]{0}', space=vmem, size = 0x8000, scoped, tag = 'output window, operand 0, single buffered']
    %8 = vsyncpa [#allocation3], 0
    %9 = vsyncpa [#allocation6], 0
    %10 = vsyncpa [#allocation4], 0
    // Predicated region
    $region2: #{tpu_custom_call.1} parent=1 // pred_check
      _
    $region3: #{tpu_custom_call.1} parent=1 // pred_check_branch
      %12 = sbr.rel (0) target = $region5
    $region4: #{tpu_custom_call.1} parent=1 // pred_region
      %s14 = ssub.s32 1024, 1024
      %15 = vsyncadd [#allocation3], %s14
      %s17 = sshll.u32 [#allocation2], 4
      %s18 = int_to_ptr.vmem [resolvable:$true] %s17
      %20 = dma.hbm_to_vmem [thread:$0]  %s0, 1024, %s18, [#allocation3]
    $region5: #{tpu_custom_call.1} parent=1 // pred_fallthru
      _
    // Predicated region
    $region6: #{tpu_custom_call.1} parent=1 // pred_check
      _
    $region7: #{tpu_custom_call.1} parent=1 // pred_check_branch
      %22 = sbr.rel (0) target = $region9
    $region8: #{tpu_custom_call.1} parent=1 // pred_region
      %s24 = ssub.s32 128, 128
      %25 = vsyncadd [#allocation6], %s24
      %s27 = sshll.u32 [#allocation5], 4
      %s28 = int_to_ptr.vmem [resolvable:$true] %s27
      %30 = dma.hbm_to_vmem [thread:$0]  %s1, 128, %s28, [#allocation6]
    $region9: #{tpu_custom_call.1} parent=1 // pred_fallthru
      _
    // Predicated region
    $region10: #{tpu_custom_call.1} parent=1 // pred_check
      _
    $region11: #{tpu_custom_call.1} parent=1 // pred_check_branch
      %32 = sbr.rel (0) target = $region13
    $region12: #{tpu_custom_call.1} parent=1 // pred_region
      %s34 = ssub.s32 128, 128
      %35 = vsyncadd [#allocation6], %s34
      %s37 = sshll.u32 [#allocation7], 4
      %s38 = int_to_ptr.vmem [resolvable:$true] %s37
      %40 = dma.hbm_to_vmem [thread:$0]  %s2, 128, %s38, [#allocation6]
    $region13: #{tpu_custom_call.1} parent=1 // pred_fallthru
      _
    // Predicated region
    $region14: #{tpu_custom_call.1} parent=1 // pred_check
      _
    $region15: #{tpu_custom_call.1} parent=1 // pred_check_branch
      %42 = sbr.rel (0) target = $region17
    $region16: #{tpu_custom_call.1} parent=1 // pred_region
      %43 = dma.done [#allocation3], 1024
    $region17: #{tpu_custom_call.1} parent=1 // pred_fallthru
      _
    // Predicated region
    $region18: #{tpu_custom_call.1} parent=1 // pred_check
      _
    $region19: #{tpu_custom_call.1} parent=1 // pred_check_branch
      %45 = sbr.rel (0) target = $region21
    $region20: #{tpu_custom_call.1} parent=1 // pred_region
      %46 = dma.done [#allocation6], 128
    $region21: #{tpu_custom_call.1} parent=1 // pred_fallthru
      _
    // Predicated region
    $region22: #{tpu_custom_call.1} parent=1 // pred_check
      _
    $region23: #{tpu_custom_call.1} parent=1 // pred_check_branch
      %48 = sbr.rel (0) target = $region25
    $region24: #{tpu_custom_call.1} parent=1 // pred_region
      %49 = dma.done [#allocation6], 128
    $region25: #{tpu_custom_call.1} parent=1 // pred_fallthru
      _
    %v50 = vld [vmem:[#allocation2] sm:$0xff]
    %v51 = vld [vmem:[#allocation2 + $0x8] sm:$0xff]
    %v52 = vld [vmem:[#allocation2 + $0x10] sm:$0xff]
    %v53 = vld [vmem:[#allocation2 + $0x18] sm:$0xff]
    %v54 = vld [vmem:[#allocation2 + $0x20] sm:$0xff]
    %v55 = vld [vmem:[#allocation2 + $0x28] sm:$0xff]
    %v56 = vld [vmem:[#allocation2 + $0x30] sm:$0xff]
    %v57 = vld [vmem:[#allocation2 + $0x38] sm:$0xff]
    %v58 = vld [vmem:[#allocation5] sm:$0xff]
    %v59 = vld [vmem:[#allocation7] sm:$0xff]
    %v60 = vadd.f32 %v50, %v51
    %v61 = vadd.f32 %v60, %v52
    %v62 = vadd.f32 %v61, %v53
    %v63 = vadd.f32 %v62, %v54
    %v64 = vadd.f32 %v63, %v55
    %v65 = vadd.f32 %v64, %v56
    %v66 = vadd.f32 %v65, %v57
    %67 = vadd.xlane.f32.xlu0 %v66
    %v68 = vpop.xlane.xlu0 %67
    %v69 = vmul.f32 %v68, 0.0009765625
    %v70 = vsub.f32 %v50, %v69
    %v71 = vsub.f32 %v51, %v69
    %v72 = vsub.f32 %v52, %v69
    %v73 = vsub.f32 %v53, %v69
    %v74 = vsub.f32 %v54, %v69
    %v75 = vsub.f32 %v55, %v69
    %v76 = vsub.f32 %v56, %v69
    %v77 = vsub.f32 %v57, %v69
    %v78 = vmul.f32 %v70, %v70
    %v79 = vmul.f32 %v71, %v71
    %v80 = vmul.f32 %v72, %v72
    %v81 = vmul.f32 %v73, %v73
    %v82 = vmul.f32 %v74, %v74
    %v83 = vmul.f32 %v75, %v75
    %v84 = vmul.f32 %v76, %v76
    %v85 = vmul.f32 %v77, %v77
    %v86 = vadd.f32 %v78, %v79
    %v87 = vadd.f32 %v86, %v80
    %v88 = vadd.f32 %v87, %v81
    %v89 = vadd.f32 %v88, %v82
    %v90 = vadd.f32 %v89, %v83
    %v91 = vadd.f32 %v90, %v84
    %v92 = vadd.f32 %v91, %v85
    %93 = vadd.xlane.f32.xlu0 %v92
    %v94 = vpop.xlane.xlu0 %93
    %v95 = vmul.f32 %v94, 0.0009775171
    %v96 = vrsqrt.pop %v95
    %v97 = vmul.f32 %v95, %v96
    %vm98 = vcmp.eq.f32.partialorder %v95, inf
    %v99 = vsel %vm98, %v95, %v97
    %vm100 = vcmp.eq.f32.partialorder %v95, 0.0
    %v101 = vand.u32 %v95, 2147483648
    %v102 = vsel %vm100, %v101, %v99
    %v103 = vadd.f32 %v102, 1e-05
    %v104 = vrcp.pop %v103
    %v105 = vmul.f32 %v70, %v104
    %v106 = vmul.f32 %v71, %v104
    %v107 = vmul.f32 %v72, %v104
    %v108 = vmul.f32 %v73, %v104
    %v109 = vmul.f32 %v74, %v104
    %v110 = vmul.f32 %v75, %v104
    %v111 = vmul.f32 %v76, %v104
    %v112 = vmul.f32 %v77, %v104
    %v114 = vlaneseq
    %v115 = vshrl.u32 %v114, 7
    %v116 = vsub.s32 0, %v115
    %v117 = vrot.slane %v58, %v116
    %v118 = vlaneseq
    %v119 = vshrl.u32 %v118, 7
    %v120 = vsub.s32 1, %v119
    %v121 = vrot.slane %v58, %v120
    %v122 = vlaneseq
    %v123 = vshrl.u32 %v122, 7
    %v124 = vsub.s32 2, %v123
    %v125 = vrot.slane %v58, %v124
    %v126 = vlaneseq
    %v127 = vshrl.u32 %v126, 7
    %v128 = vsub.s32 3, %v127
    %v129 = vrot.slane %v58, %v128
    %v130 = vlaneseq
    %v131 = vshrl.u32 %v130, 7
    %v132 = vsub.s32 4, %v131
    %v133 = vrot.slane %v58, %v132
    %v134 = vlaneseq
    %v135 = vshrl.u32 %v134, 7
    %v136 = vsub.s32 5, %v135
    %v137 = vrot.slane %v58, %v136
    %v138 = vlaneseq
    %v139 = vshrl.u32 %v138, 7
    %v140 = vsub.s32 6, %v139
    %v141 = vrot.slane %v58, %v140
    %v142 = vlaneseq
    %v143 = vshrl.u32 %v142, 7
    %v144 = vsub.s32 7, %v143
    %v145 = vrot.slane %v58, %v144
    %v154 = vmul.f32 %v105, %v117
    %v155 = vmul.f32 %v106, %v121
    %v156 = vmul.f32 %v107, %v125
    %v157 = vmul.f32 %v108, %v129
    %v158 = vmul.f32 %v109, %v133
    %v159 = vmul.f32 %v110, %v137
    %v160 = vmul.f32 %v111, %v141
    %v161 = vmul.f32 %v112, %v145
    %v163 = vlaneseq
    %v164 = vshrl.u32 %v163, 7
    %v165 = vsub.s32 0, %v164
    %v166 = vrot.slane %v59, %v165
    %v167 = vlaneseq
    %v168 = vshrl.u32 %v167, 7
    %v169 = vsub.s32 1, %v168
    %v170 = vrot.slane %v59, %v169
    %v171 = vlaneseq
    %v172 = vshrl.u32 %v171, 7
    %v173 = vsub.s32 2, %v172
    %v174 = vrot.slane %v59, %v173
    %v175 = vlaneseq
    %v176 = vshrl.u32 %v175, 7
    %v177 = vsub.s32 3, %v176
    %v178 = vrot.slane %v59, %v177
    %v179 = vlaneseq
    %v180 = vshrl.u32 %v179, 7
    %v181 = vsub.s32 4, %v180
    %v182 = vrot.slane %v59, %v181
    %v183 = vlaneseq
    %v184 = vshrl.u32 %v183, 7
    %v185 = vsub.s32 5, %v184
    %v186 = vrot.slane %v59, %v185
    %v187 = vlaneseq
    %v188 = vshrl.u32 %v187, 7
    %v189 = vsub.s32 6, %v188
    %v190 = vrot.slane %v59, %v189
    %v191 = vlaneseq
    %v192 = vshrl.u32 %v191, 7
    %v193 = vsub.s32 7, %v192
    %v194 = vrot.slane %v59, %v193
    %v203 = vadd.f32 %v154, %v166
    %v204 = vadd.f32 %v155, %v170
    %v205 = vadd.f32 %v156, %v174
    %v206 = vadd.f32 %v157, %v178
    %v207 = vadd.f32 %v158, %v182
    %v208 = vadd.f32 %v159, %v186
    %v209 = vadd.f32 %v160, %v190
    %v210 = vadd.f32 %v161, %v194
    %211 = vst [vmem:[#allocation8] sm:$0xff] %v203
    %212 = vst [vmem:[#allocation8 + $0x8] sm:$0xff] %v204
    %213 = vst [vmem:[#allocation8 + $0x10] sm:$0xff] %v205
    %214 = vst [vmem:[#allocation8 + $0x18] sm:$0xff] %v206
    %215 = vst [vmem:[#allocation8 + $0x20] sm:$0xff] %v207
    %216 = vst [vmem:[#allocation8 + $0x28] sm:$0xff] %v208
    %217 = vst [vmem:[#allocation8 + $0x30] sm:$0xff] %v209
    %218 = vst [vmem:[#allocation8 + $0x38] sm:$0xff] %v210
    // Predicated region
    $region26: #{tpu_custom_call.1} parent=1 // pred_check
      _
    $region27: #{tpu_custom_call.1} parent=1 // pred_check_branch
      %220 = sbr.rel (0) target = $region29
    $region28: #{tpu_custom_call.1} parent=1 // pred_region
      %s222 = ssub.s32 1024, 1024
      %223 = vsyncadd [#allocation4], %s222
      %s225 = sshll.u32 [#allocation8], 4
      %s226 = int_to_ptr.vmem [resolvable:$true] %s225
      %228 = dma.vmem_to_hbm [thread:$0]  %s226, 1024, %s3, [#allocation4]
    $region29: #{tpu_custom_call.1} parent=1 // pred_fallthru
      _
    // Predicated region
    $region30: #{tpu_custom_call.1} parent=1 // pred_check
      _
    $region31: #{tpu_custom_call.1} parent=1 // pred_check_branch
      %230 = sbr.rel (0) target = $region33
    $region32: #{tpu_custom_call.1} parent=1 // pred_region
      %231 = dma.done [#allocation4], 1024
    $region33: #{tpu_custom_call.1} parent=1 // pred_fallthru
      _
    %232 = vsyncpa [#allocation3], 1
    %233 = vsyncpa [#allocation6], 1
    %234 = vsyncpa [#allocation4], 1

</llo_original>
